<compile_context>
chip_gen: v7x
topology: tpu7x:2x2x1
jax: 0.10.0
libtpu: 0.0.40
codegen_flags: <defaults>
</compile_context>

<pallas_src>
import functools

import jax
import jax.numpy as jnp
from jax.experimental import pallas as pl
from jax.experimental.pallas import tpu as pltpu

LANES = 128
MAX_TILE_PIX = 32768  # pixels per grid step (upper cap; VMEM budget may lower it)


def _round_up(x, m):
    return (x + m - 1) // m * m


def _pick_tile_and_vmem(C, HW, x_itemsize, t_itemsize):
    """Pick the pixel-tile size from the device VMEM capacity (trace time)."""
    try:
        vmem_cap = pltpu.get_tpu_info().vmem_capacity_bytes
    except Exception:
        vmem_cap = 64 << 20  # conservative fallback (v7x per-core VMEM)
    vmem_limit = int(min(vmem_cap // 2, 64 << 20))
    # VMEM bytes per pixel of tile: double-buffered logits + labels input blocks
    # plus the (double-buffered) f32 per-batch accumulator/output block.
    per_pix = 2 * (C * x_itemsize + t_itemsize) + 2 * 4
    budget = max(vmem_limit - (4 << 20), 4 << 20)  # headroom for compiler scratch
    cap = max(LANES, (budget // per_pix) // LANES * LANES)
    cap = min(cap, MAX_TILE_PIX)
    tile = int(min(cap, _round_up(HW, LANES)))
    return tile, vmem_limit


def _dice_kernel(x_ref, t_ref, out_ref, *, hw, tile, mask_tail):
    """Accumulate per-pixel softmax[label] into a per-batch (1, tile) vector.

    x_ref   : VMEM [1, C, TILE]  logits (any float dtype; cast to f32 here)
    t_ref   : VMEM [1, 1, TILE]  integer class labels in [0, C)
    out_ref : VMEM [1, 1, TILE]  f32 per-batch intersection partials
                                 (accumulator-output: same block for every j)
    """
    j = pl.program_id(1)

    @pl.when(j == 0)
    def _():
        out_ref[...] = jnp.zeros_like(out_ref)

    x = x_ref[...].astype(jnp.float32)     # (1, C, TILE)
    t = t_ref[...].astype(jnp.int32)       # (1, 1, TILE)

    # Per-pixel softmax pieces over the channel (sublane) axis.
    m = jnp.max(x, axis=1, keepdims=True)            # (1, 1, TILE)
    e = jnp.exp(x - m)                                # (1, C, TILE)
    s = jnp.sum(e, axis=1, keepdims=True)             # (1, 1, TILE)

    # One-hot gather of exp(logit[label]) via iota compare + sublane reduce.
    cls = jax.lax.broadcasted_iota(jnp.int32, x.shape, 1)
    num = jnp.sum(jnp.where(cls == t, e, 0.0), axis=1, keepdims=True)  # (1,1,TILE)

    # p[label] = num / s; approx EUP reciprocal on the reduced (1, TILE) denom.
    inter = num * pl.reciprocal(s, approx=True)       # (1, 1, TILE)

    if mask_tail:
        # Last tile may extend past HW (no HBM padding copies): mask tail lanes.
        lane = jax.lax.broadcasted_iota(jnp.int32, inter.shape, 2)
        inter = jnp.where(j * tile + lane < hw, inter, 0.0)

    out_ref[...] += inter


@functools.partial(jax.jit, static_argnames=("smooth",))
def dice_loss_multiclass(inputs, targets, smooth=1e-5):
    """Pallas implementation of DiceLossMultiClass.forward (f32 scalar)."""
    B, C, H, W = inputs.shape
    HW = H * W

    x = inputs.reshape(B, C, HW)          # no dtype cast here (cast per tile)
    t = targets.reshape(B, 1, HW)
    if not jnp.issubdtype(t.dtype, jnp.integer):
        t = t.astype(jnp.int32)

    tile, vmem_limit = _pick_tile_and_vmem(C, HW, x.dtype.itemsize, t.dtype.itemsize)
    num_tiles = pl.cdiv(HW, tile)
    mask_tail = (HW % tile) != 0

    kernel = functools.partial(_dice_kernel, hw=HW, tile=tile, mask_tail=mask_tail)

    partials = pl.pallas_call(
        kernel,
        out_shape=jax.ShapeDtypeStruct((B, 1, tile), jnp.float32),
        grid_spec=pltpu.PrefetchScalarGridSpec(
            num_scalar_prefetch=0,
            grid=(B, num_tiles),
            in_specs=[
                pl.BlockSpec((1, C, tile), lambda b, j: (b, 0, j)),
                pl.BlockSpec((1, 1, tile), lambda b, j: (b, 0, j)),
            ],
            out_specs=pl.BlockSpec((1, 1, tile), lambda b, j: (b, 0, 0)),
        ),
        compiler_params=pltpu.CompilerParams(
            dimension_semantics=("parallel", "arbitrary"),
            vmem_limit_bytes=vmem_limit,
        ),
    )(x, t)

    intersection = jnp.sum(partials)
    # sum(softmax probs) == B*HW and sum(one-hot targets) == B*HW analytically
    # (assumes labels are in [0, C), as in the PyTorch module).
    denom = jnp.float32(2 * B * HW) + smooth
    dice = (2.0 * intersection + smooth) / denom
    return 1.0 - dice


def _reference(inputs, targets, smooth=1e-5):
    """Pure-JAX mirror of the PyTorch DiceLossMultiClass.forward."""
    B, C, H, W = inputs.shape
    p = jax.nn.softmax(inputs.astype(jnp.float32), axis=1)
    labels = targets.reshape(B, H, W)
    onehot = jax.nn.one_hot(labels, C, dtype=jnp.float32)      # (B,H,W,C)
    onehot = jnp.transpose(onehot, (0, 3, 1, 2))               # (B,C,H,W)
    pf = p.reshape(-1)
    tf = onehot.reshape(-1)
    intersection = jnp.sum(pf * tf)
    dice = (2.0 * intersection + smooth) / (jnp.sum(pf) + jnp.sum(tf) + smooth)
    return 1.0 - dice


if __name__ == "__main__":
    key = jax.random.PRNGKey(0)
    k1, k2 = jax.random.split(key)
    B, C, H, W = 2, 4, 16, 16
    inputs = jax.random.normal(k1, (B, C, H, W), dtype=jnp.float32)
    targets = jax.random.randint(k2, (B, 1, H, W), 0, C, dtype=jnp.int32)

    loss = dice_loss_multiclass(inputs, targets, smooth=1e-5)
    loss = jax.block_until_ready(loss)

    ref = _reference(inputs, targets, smooth=1e-5)
    # Tolerance accounts for the approx EUP reciprocal and the analytic
    # sum(softmax)=B*HW substitution (both far below this bound).
    assert jnp.allclose(loss, ref, rtol=1e-4, atol=1e-4), (loss, ref)
    print("KERNEL_OK")
</pallas_src>

<mosaic_0001>
module attributes {stable_mosaic.version = 11 : i64} {
  func.func @_dice_kernel(%arg0: i32, %arg1: i32, %arg2: memref<1x4x256xf32, #tpu.memory_space<vmem>>, %arg3: memref<1x1x256xi32, #tpu.memory_space<vmem>>, %arg4: memref<1x1x256xf32, #tpu.memory_space<vmem>>) attributes {dimension_semantics = [#tpu.dimension_semantics<parallel>, #tpu.dimension_semantics<arbitrary>], iteration_bounds = array<i64: 2, 1>, scalar_prefetch = 0 : i64, scratch_operands = 0 : i64, tpu.core_type = #tpu.core_type<tc>, window_params = [{transform_indices = @transform_0, window_bounds = array<i64: 1, 4, 256>}, {transform_indices = @transform_1, window_bounds = array<i64: 1, 1, 256>}, {transform_indices = @transform_2, window_bounds = array<i64: 1, 1, 256>}]} {
    %c0_i32 = arith.constant 0 : i32
    %0 = arith.cmpi eq, %arg1, %c0_i32 : i32
    %1 = arith.extui %0 : i1 to i32
    %c0_i32_0 = arith.constant 0 : i32
    %2 = arith.cmpi ne, %1, %c0_i32_0 : i32
    scf.if %2 {
      %cst_15 = arith.constant 0.000000e+00 : f32
      %24 = vector.broadcast %cst_15 : f32 to vector<1x1x256xf32>
      %c0_16 = arith.constant 0 : index
      %c0_17 = arith.constant 0 : index
      %c0_18 = arith.constant 0 : index
      %25 = vector.load %arg4[%c0_16, %c0_17, %c0_18] : memref<1x1x256xf32, #tpu.memory_space<vmem>>, vector<1x1x256xf32>
      tpu.vector_store %arg4[%c0_16, %c0_17, %c0_18], %24 {strides = array<i32>} : memref<1x1x256xf32, #tpu.memory_space<vmem>>, vector<1x1x256xf32>,
    } else {
    }
    %c0 = arith.constant 0 : index
    %c0_1 = arith.constant 0 : index
    %c0_2 = arith.constant 0 : index
    %3 = vector.load %arg2[%c0, %c0_1, %c0_2] : memref<1x4x256xf32, #tpu.memory_space<vmem>>, vector<1x4x256xf32>
    %c0_3 = arith.constant 0 : index
    %c0_4 = arith.constant 0 : index
    %c0_5 = arith.constant 0 : index
    %4 = vector.load %arg3[%c0_3, %c0_4, %c0_5] : memref<1x1x256xi32, #tpu.memory_space<vmem>>, vector<1x1x256xi32>
    %cst = arith.constant dense<0xFF800000> : vector<1x256xf32>
    %5 = vector.multi_reduction <maximumf>, %3, %cst [1] : vector<1x4x256xf32> to vector<1x256xf32>
    %6 = vector.shape_cast %5 : vector<1x256xf32> to vector<1x1x256xf32>
    %7 = vector.broadcast %6 : vector<1x1x256xf32> to vector<1x4x256xf32>
    %8 = arith.subf %3, %7 : vector<1x4x256xf32>
    %9 = math.exp %8 : vector<1x4x256xf32>
    %cst_6 = arith.constant dense<0.000000e+00> : vector<1x256xf32>
    %10 = vector.multi_reduction <add>, %9, %cst_6 [1] : vector<1x4x256xf32> to vector<1x256xf32>
    %11 = vector.shape_cast %10 : vector<1x256xf32> to vector<1x1x256xf32>
    %12 = tpu.iota {dimensions = array<i32: 1>} : vector<1x4x256xi32>
    %13 = vector.broadcast %4 : vector<1x1x256xi32> to vector<1x4x256xi32>
    %14 = arith.cmpi eq, %12, %13 : vector<1x4x256xi32>
    %cst_7 = arith.constant 0.000000e+00 : f32
    %15 = vector.broadcast %cst_7 : f32 to vector<1x4x256xf32>
    %16 = arith.select %14, %9, %15 : vector<1x4x256xi1>, vector<1x4x256xf32>
    %cst_8 = arith.constant dense<0.000000e+00> : vector<1x256xf32>
    %17 = vector.multi_reduction <add>, %16, %cst_8 [1] : vector<1x4x256xf32> to vector<1x256xf32>
    %18 = vector.shape_cast %17 : vector<1x256xf32> to vector<1x1x256xf32>
    %19 = tpu.reciprocal %11 {approx = true} : vector<1x1x256xf32> -> vector<1x1x256xf32>
    %20 = arith.mulf %18, %19 : vector<1x1x256xf32>
    %c0_9 = arith.constant 0 : index
    %c0_10 = arith.constant 0 : index
    %c0_11 = arith.constant 0 : index
    %21 = vector.load %arg4[%c0_9, %c0_10, %c0_11] : memref<1x1x256xf32, #tpu.memory_space<vmem>>, vector<1x1x256xf32>
    %22 = arith.addf %21, %20 : vector<1x1x256xf32>
    %c0_12 = arith.constant 0 : index
    %c0_13 = arith.constant 0 : index
    %c0_14 = arith.constant 0 : index
    %23 = vector.load %arg4[%c0_12, %c0_13, %c0_14] : memref<1x1x256xf32, #tpu.memory_space<vmem>>, vector<1x1x256xf32>
    tpu.vector_store %arg4[%c0_12, %c0_13, %c0_14], %22 {strides = array<i32>} : memref<1x1x256xf32, #tpu.memory_space<vmem>>, vector<1x1x256xf32>,
    return
  }
  func.func @transform_0(%arg0: i32, %arg1: i32) -> (i32, i32, i32) {
    %c0_i32 = arith.constant 0 : i32
    %c0_i32_0 = arith.constant 0 : i32
    return %arg0, %c0_i32, %arg1 : i32, i32, i32
  }
  func.func @transform_1(%arg0: i32, %arg1: i32) -> (i32, i32, i32) {
    %c0_i32 = arith.constant 0 : i32
    %c0_i32_0 = arith.constant 0 : i32
    return %arg0, %c0_i32, %arg1 : i32, i32, i32
  }
  func.func @transform_2(%arg0: i32, %arg1: i32) -> (i32, i32, i32) {
    %c0_i32 = arith.constant 0 : i32
    %c0_i32_0 = arith.constant 0 : i32
    %c0_i32_1 = arith.constant 0 : i32
    return %arg0, %c0_i32, %c0_i32_0 : i32, i32, i32
  }
}

</mosaic_0001>

<llo_original>
// kernel: dice_loss_multiclass.1
$region0: #{dice_loss_multiclass.1}
  #allocation0 [shape = 'u32[]', space=smem, size = 0x4, offset = 0x4, fixed_abs, tag = 'smem constant byte address 0x4 - core index']
  #allocation1 [shape = 'u32[144,128]{1,0:T(1,128)}', space=vmem, size = 0x12000, scoped, tag = 'internal scratch']
  %s0 = inlined_call_operand.vmem [shape: f32[2,4,256], index: 0, kind: input, shape index: {}]
  %s1 = inlined_call_operand.vmem [shape: s32[2,1,256], index: 1, kind: input, shape index: {}]
  %s2 = inlined_call_operand.vmem [shape: f32[2,1,256], index: 2, kind: output, shape index: {}]
  %s3 = sld [smem:[#allocation0]]
  $region45: #{dice_loss_multiclass.1} parent=0
    _
  %s5 = ssub.s32 1, %s3
  %s6 = scalar_select 0, %s5, %s3
  loop: start=0, step=1, limit=4
  $region2: #{dice_loss_multiclass.1} parent=0 // loop_pre_header
    _
  $region3: #{dice_loss_multiclass.1} parent=0 // loop_header
    %s8 = sphi 0, %s12
    %p9 = scmp.ge.s32.totalorder %s8, 4
    %s15 = sphi 0, %s27
    %s16 = sphi 0, %s23
    %s17 = sphi 0, %s15
    %s18 = sphi 0, %s16
    %s19 = sphi 0, %s17
    %s20 = sphi 0, %s18
    %s32 = sphi 0, %s34
    %s35 = sphi 0, %s32
    %s36 = sphi 0, %s35
    %s52 = sphi 0, %s36
    %s60 = sphi 0, %s62
    %s63 = sphi 0, %s60
    %s64 = sphi 0, %s63
    %s80 = sphi 0, %s64
    %s86 = sphi 0, %s88
    %s89 = sphi 0, %s86
    %s90 = sphi 0, %s89
    %s106 = sphi 0, %s90
  $region4: #{dice_loss_multiclass.1} parent=0 // loop_header_branch
    %11 = sbr.rel (%p9) target = $region8
  $region5: #{dice_loss_multiclass.1} parent=0 // loop_body
    %s13 = ssub.s32 %s8, 1
    %s14 = ssub.s32 %s8, 2
    %s21 = sadd.s32 1, %s16
    %p22 = scmp.ge.s32.totalorder %s21, 1
    %s23 = scalar_select %p22, 0, %s21
    %s24 = sadd.s32 1, %s15
    %s25 = scalar_select %p22, %s24, %s15
    %p26 = scmp.ge.s32.totalorder %s25, 2
    %s27 = scalar_select %p26, 0, %s25
    %s28 = ssub.s32 %s15, %s27
    %s29 = ssub.s32 %s16, %s23
    %s30 = sor.u32 %s28, %s29
    %p31 = scmp.eq.s32.totalorder %s30, 0
    %s33 = sadd.s32 %s32, 1
    %s34 = scalar_select %p31, %s32, %s33
    %p37 = pneg %p31
    %p38 = scmp.eq.s32.totalorder %s8, 1
    %p39 = por %p37, %p38
    %p40 = scmp.ne.s32.totalorder %s32, %s35
    %p41 = scmp.eq.s32.totalorder %s8, 0
    %p42 = por %p40, %p41
    %p43 = scmp.ne.s32.totalorder %s32, %s35
    %p44 = scmp.eq.s32.totalorder %s13, 1
    %p45 = por %p43, %p44
    %p46 = scmp.ne.s32.totalorder %s35, %s36
    %p47 = scmp.eq.s32.totalorder %s13, 0
    %p48 = por %p46, %p47
    %p49 = scmp.ne.s32.totalorder %s35, %s36
    %p50 = scmp.eq.s32.totalorder %s14, 1
    %p51 = por %p49, %p50
    %p53 = scmp.ne.s32.totalorder %s36, %s52
    %p54 = scmp.eq.s32.totalorder %s14, 0
    %p55 = por %p53, %p54
    %s56 = ssub.s32 %s15, %s27
    %s57 = ssub.s32 %s16, %s23
    %s58 = sor.u32 %s56, %s57
    %p59 = scmp.eq.s32.totalorder %s58, 0
    %s61 = sadd.s32 %s60, 1
    %s62 = scalar_select %p59, %s60, %s61
    %p65 = pneg %p59
    %p66 = scmp.eq.s32.totalorder %s8, 1
    %p67 = por %p65, %p66
    %p68 = scmp.ne.s32.totalorder %s60, %s63
    %p69 = scmp.eq.s32.totalorder %s8, 0
    %p70 = por %p68, %p69
    %p71 = scmp.ne.s32.totalorder %s60, %s63
    %p72 = scmp.eq.s32.totalorder %s13, 1
    %p73 = por %p71, %p72
    %p74 = scmp.ne.s32.totalorder %s63, %s64
    %p75 = scmp.eq.s32.totalorder %s13, 0
    %p76 = por %p74, %p75
    %p77 = scmp.ne.s32.totalorder %s63, %s64
    %p78 = scmp.eq.s32.totalorder %s14, 1
    %p79 = por %p77, %p78
    %p81 = scmp.ne.s32.totalorder %s64, %s80
    %p82 = scmp.eq.s32.totalorder %s14, 0
    %p83 = por %p81, %p82
    %s84 = ssub.s32 %s15, %s27
    %p85 = scmp.eq.s32.totalorder %s84, 0
    %s87 = sadd.s32 %s86, 1
    %s88 = scalar_select %p85, %s86, %s87
    %p91 = pneg %p85
    %p92 = scmp.eq.s32.totalorder %s8, 1
    %p93 = por %p91, %p92
    %p94 = scmp.ne.s32.totalorder %s86, %s89
    %p95 = scmp.eq.s32.totalorder %s8, 0
    %p96 = por %p94, %p95
    %p97 = scmp.ne.s32.totalorder %s86, %s89
    %p98 = scmp.eq.s32.totalorder %s13, 1
    %p99 = por %p97, %p98
    %p100 = scmp.ne.s32.totalorder %s89, %s90
    %p101 = scmp.eq.s32.totalorder %s13, 0
    %p102 = por %p100, %p101
    %p103 = scmp.ne.s32.totalorder %s89, %s90
    %p104 = scmp.eq.s32.totalorder %s14, 1
    %p105 = por %p103, %p104
    %p107 = scmp.ne.s32.totalorder %s90, %s106
    %p108 = scmp.eq.s32.totalorder %s14, 0
    %p109 = por %p107, %p108
    %p110 = scmp.le.s32.totalorder 1, %s8
    %p111 = scmp.lt.s32.totalorder %s8, 3
    %p112 = pnand %p110, %p111
    %p113 = pneg %p112
    // Predicated region
    $region9: #{dice_loss_multiclass.1} parent=5 // pred_check
      _
    $region10: #{dice_loss_multiclass.1} parent=5 // pred_check_branch
      %115 = sbr.rel (%p112) target = $region12
    $region11: #{dice_loss_multiclass.1} parent=5 // pred_region
      %s116 = ssub.s32 %s8, 1
    $region12: #{dice_loss_multiclass.1} parent=5 // pred_fallthru
      _
    %p117 = scmp.lt.s32.totalorder %s8, 2
    // Predicated region
    $region13: #{dice_loss_multiclass.1} parent=5 // pred_check
      %p118 = pneg %p117
    $region14: #{dice_loss_multiclass.1} parent=5 // pred_check_branch
      %120 = sbr.rel (%p118) target = $region16
    $region15: #{dice_loss_multiclass.1} parent=5 // pred_region
      // Predicated region
      $region17: #{dice_loss_multiclass.1} parent=15 // pred_check
        %p121 = pneg %p42
      $region18: #{dice_loss_multiclass.1} parent=15 // pred_check_branch
        %123 = sbr.rel (%p121) target = $region20
      $region19: #{dice_loss_multiclass.1} parent=15 // pred_region
        %s124 = smul.u32 2, %s16
        %p125 = scmp.lt.s32.totalorder %s15, 1
        %s126 = scalar_select %p125, %s15, 1
        %p127 = scmp.lt.s32.totalorder %s124, 1
        %s128 = scalar_select %p127, %s124, 1
        %s129 = smul.addr %s126, 2
        %s130 = sadd.s32 %s128, %s129
        %s131 = smul.addr %s130, 4
        %s132 = scalar_lea.vmem %s0, %s131
        %s133 = smul.u32 2, %s16
      $region20: #{dice_loss_multiclass.1} parent=15 // pred_fallthru
        _
      // Predicated region
      $region21: #{dice_loss_multiclass.1} parent=15 // pred_check
        %p134 = pneg %p70
      $region22: #{dice_loss_multiclass.1} parent=15 // pred_check_branch
        %136 = sbr.rel (%p134) target = $region24
      $region23: #{dice_loss_multiclass.1} parent=15 // pred_region
        %s137 = smul.u32 2, %s16
        %p138 = scmp.lt.s32.totalorder %s15, 1
        %s139 = scalar_select %p138, %s15, 1
        %p140 = scmp.lt.s32.totalorder %s137, 1
        %s141 = scalar_select %p140, %s137, 1
        %s142 = smul.addr %s139, 2
        %s143 = sadd.s32 %s141, %s142
        %s144 = scalar_lea.vmem %s1, %s143
        %s145 = smul.u32 2, %s16
      $region24: #{dice_loss_multiclass.1} parent=15 // pred_fallthru
        _
    $region16: #{dice_loss_multiclass.1} parent=5 // pred_fallthru
      _
    %p146 = scmp.le.s32.totalorder 1, %s8
    %p147 = scmp.lt.s32.totalorder %s8, 3
    %p148 = pnand %p146, %p147
    %p149 = pneg %p148
    // Predicated region
    $region25: #{dice_loss_multiclass.1} parent=5 // pred_check
      _
    $region26: #{dice_loss_multiclass.1} parent=5 // pred_check_branch
      %151 = sbr.rel (%p148) target = $region28
    $region27: #{dice_loss_multiclass.1} parent=5 // pred_region
      %s152 = ssub.s32 %s8, 1
      %s153 = smul.u32 2, %s18
      %p154 = scmp.lt.s32.totalorder %s17, 1
      %s155 = scalar_select %p154, %s17, 1
      %p156 = scmp.lt.s32.totalorder %s153, 1
      %s157 = scalar_select %p156, %s153, 1
      %s158 = smul.addr %s155, 2
      %s159 = sadd.s32 %s157, %s158
      %s160 = smul.addr %s159, 4
      %s161 = scalar_lea.vmem %s0, %s160
      %p162 = pneg %p48
      %p163 = pneg %p45
      %s164 = smul.u32 2, %s18
      %p165 = scmp.lt.s32.totalorder %s17, 1
      %s166 = scalar_select %p165, %s17, 1
      %p167 = scmp.lt.s32.totalorder %s164, 1
      %s168 = scalar_select %p167, %s164, 1
      %s169 = smul.addr %s166, 2
      %s170 = sadd.s32 %s168, %s169
      %s171 = scalar_lea.vmem %s1, %s170
      %p172 = pneg %p76
      %p173 = pneg %p73
      %p174 = pneg %p102
      %p175 = pneg %p99
      %p176 = scmp.lt.s32.totalorder %s17, 1
      %s177 = scalar_select %p176, %s17, 1
      %s178 = smul.addr %s177, 2
      %s179 = scalar_lea.vmem %s2, %s178
      %s180 = smul.u32 2, %s18
      %p181 = scmp.lt.s32.totalorder %s17, 1
      %s182 = scalar_select %p181, %s17, 1
      %p183 = scmp.lt.s32.totalorder %s180, 1
      %s184 = scalar_select %p183, %s180, 1
      %s185 = smul.addr %s182, 2
      %s186 = sadd.s32 %s184, %s185
      %s187 = smul.addr %s186, 4
      %s188 = scalar_lea.vmem %s0, %s187
      %s189 = smul.u32 2, %s18
      %s190 = smul.u32 2, %s18
      %p191 = scmp.lt.s32.totalorder %s17, 1
      %s192 = scalar_select %p191, %s17, 1
      %p193 = scmp.lt.s32.totalorder %s190, 1
      %s194 = scalar_select %p193, %s190, 1
      %s195 = smul.addr %s192, 2
      %s196 = sadd.s32 %s194, %s195
      %s197 = scalar_lea.vmem %s1, %s196
      %s198 = smul.u32 2, %s18
      %p199 = scmp.lt.s32.totalorder %s17, 1
      %s200 = scalar_select %p199, %s17, 1
      %s201 = smul.addr %s200, 2
      %s202 = scalar_lea.vmem %s2, %s201
      %p203 = scmp.eq.s32.totalorder %s18, 0
      // Predicated region
      $region29: #{dice_loss_multiclass.1} parent=27 // pred_check
        %p204 = pneg %p203
      $region30: #{dice_loss_multiclass.1} parent=27 // pred_check_branch
        %206 = sbr.rel (%p204) target = $region32
      $region31: #{dice_loss_multiclass.1} parent=27 // pred_region
        %v207 = vlaneseq
        %vm208 = vcmp.ge.s32.totalorder %v207, 0
        %vm209 = vcmp.lt.s32.totalorder %v207, 256
        %vm210 = vmand %vm208, %vm209
        %211 = vst.msk [vmem:[%s202] sm:$0x3] %vm210, 0.0
      $region32: #{dice_loss_multiclass.1} parent=27 // pred_fallthru
        _
      %v212 = vld [vmem:[%s188] sm:$0xff]
      %v213 = vld [vmem:[%s197] sm:$0x3]
      %v215 = vcombine.high %v212, %v212
      %vm217 = vcmask 1043456
      %v218 = vsel %vm217, %v212, -inf
      %v219 = vrot.slane %v218, 4
      %v220 = vmax.f32 %v218, %v219
      %v221 = vrot.slane %v220, 2
      %v222 = vmax.f32 %v220, %v221
      %v223 = vrot.slane %v222, 1
      %v224 = vmax.f32 %v222, %v223
      %v225 = vsel %vm217, %v215, -inf
      %v226 = vrot.slane %v225, 4
      %v227 = vmax.f32 %v225, %v226
      %v228 = vrot.slane %v227, 2
      %v229 = vmax.f32 %v227, %v228
      %v230 = vrot.slane %v229, 1
      %v231 = vmax.f32 %v229, %v230
      %v234 = vcombine.low %v224, %v231
      %v236 = vsub.f32 %v212, %v234
      %v237 = vmul.f32 %v236, 1.442695
      %v238 = vpow.pop %v237
      %v240 = vcombine.high %v238, %v238
      %v242 = vsel %vm217, %v238, 0.0
      %v243 = vrot.slane %v242, 4
      %v244 = vadd.f32 %v242, %v243
      %v245 = vrot.slane %v244, 2
      %v246 = vadd.f32 %v244, %v245
      %v247 = vrot.slane %v246, 1
      %v248 = vadd.f32 %v246, %v247
      %v249 = vsel %vm217, %v240, 0.0
      %v250 = vrot.slane %v249, 4
      %v251 = vadd.f32 %v249, %v250
      %v252 = vrot.slane %v251, 2
      %v253 = vadd.f32 %v251, %v252
      %v254 = vrot.slane %v253, 1
      %v255 = vadd.f32 %v253, %v254
      %v256 = vlaneseq
      %v257 = vshrl.u32 %v256, 7
      %v258 = vlaneseq
      %v259 = vshrl.u32 %v258, 7
      %v260 = vsub.s32 0, %v259
      %v261 = vrot.slane %v213, %v260
      %v262 = vlaneseq
      %v263 = vshrl.u32 %v262, 7
      %v264 = vsub.s32 1, %v263
      %v265 = vrot.slane %v213, %v264
      %vm266 = vcmp.eq.s32.totalorder %v257, %v261
      %vm267 = vcmp.eq.s32.totalorder %v257, %v265
      %v268 = vsel %vm266, %v238, 0.0
      %v269 = vsel %vm267, %v240, 0.0
      %v270 = vsel %vm217, %v268, 0.0
      %v271 = vrot.slane %v270, 4
      %v272 = vadd.f32 %v270, %v271
      %v273 = vrot.slane %v272, 2
      %v274 = vadd.f32 %v272, %v273
      %v275 = vrot.slane %v274, 1
      %v276 = vadd.f32 %v274, %v275
      %v277 = vsel %vm217, %v269, 0.0
      %v278 = vrot.slane %v277, 4
      %v279 = vadd.f32 %v277, %v278
      %v280 = vrot.slane %v279, 2
      %v281 = vadd.f32 %v279, %v280
      %v282 = vrot.slane %v281, 1
      %v283 = vadd.f32 %v281, %v282
      %v284 = vrcp.pop %v248
      %v285 = vrcp.pop %v255
      %v286 = vmul.f32 %v276, %v284
      %v287 = vmul.f32 %v283, %v285
      %v288 = vld [vmem:[%s202] sm:$0x3]
      %v291 = vcombine.low %v286, %v287
      %v293 = vunpack.c.l.s4 1966171168
      %v294 = vunpack.c.0.s8 %v293
      %v295 = vlaneseq
      %v296 = vshrl.u32 %v295, 7
      %v297 = vsub.s32 %v294, %v296
      %v298 = vrot.slane %v291, %v297
      %v300 = vunpack.c.l.s4 1966171168
      %v301 = vunpack.c.0.s8 %v300
      %v302 = vlaneseq
      %v303 = vshrl.u32 %v302, 7
      %v304 = vsub.s32 %v301, %v303
      %v305 = vrot.slane %v298, %v304
      %v307 = vadd.f32 %v288, %v305
      %v308 = vlaneseq
      %vm309 = vcmp.ge.s32.totalorder %v308, 0
      %vm310 = vcmp.lt.s32.totalorder %v308, 256
      %vm311 = vmand %vm309, %vm310
      %312 = vst.msk [vmem:[%s202] sm:$0x3] %vm311, %v307
      %p313 = scmp.lt.s32.totalorder %s17, 1
      %s314 = scalar_select %p313, %s17, 1
      %s315 = smul.addr %s314, 2
      %s316 = scalar_lea.vmem %s2, %s315
      // Predicated region
      $region33: #{dice_loss_multiclass.1} parent=27 // pred_check
        %p317 = pneg %p99
      $region34: #{dice_loss_multiclass.1} parent=27 // pred_check_branch
        %319 = sbr.rel (%p317) target = $region36
      $region35: #{dice_loss_multiclass.1} parent=27 // pred_region
        _
      $region36: #{dice_loss_multiclass.1} parent=27 // pred_fallthru
        _
    $region28: #{dice_loss_multiclass.1} parent=5 // pred_fallthru
      _
    %p320 = scmp.le.s32.totalorder 2, %s8
    // Predicated region
    $region37: #{dice_loss_multiclass.1} parent=5 // pred_check
      %p321 = pneg %p320
    $region38: #{dice_loss_multiclass.1} parent=5 // pred_check_branch
      %323 = sbr.rel (%p321) target = $region40
    $region39: #{dice_loss_multiclass.1} parent=5 // pred_region
      %s324 = ssub.s32 %s8, 2
      // Predicated region
      $region41: #{dice_loss_multiclass.1} parent=39 // pred_check
        %p325 = pneg %p105
      $region42: #{dice_loss_multiclass.1} parent=39 // pred_check_branch
        %327 = sbr.rel (%p325) target = $region44
      $region43: #{dice_loss_multiclass.1} parent=39 // pred_region
        %p328 = scmp.lt.s32.totalorder %s19, 1
        %s329 = scalar_select %p328, %s19, 1
        %s330 = smul.addr %s329, 2
        %s331 = scalar_lea.vmem %s2, %s330
      $region44: #{dice_loss_multiclass.1} parent=39 // pred_fallthru
        _
    $region40: #{dice_loss_multiclass.1} parent=5 // pred_fallthru
      _
  $region6: #{dice_loss_multiclass.1} parent=0 // loop_footer
    %s12 = sadd.s32 1, %s8
  $region7: #{dice_loss_multiclass.1} parent=0 // loop_footer_branch
    %7 = sbr.rel target = $region3
  $region8: #{dice_loss_multiclass.1} parent=0 // loop_exit
    _

</llo_original>
